<compile_context>
chip_gen: v7x
topology: tpu7x:2x2x1
jax: 0.10.0
libtpu: 0.0.40
codegen_flags: <defaults>
</compile_context>

<pallas_src>
import functools

import jax
import jax.numpy as jnp
from jax.experimental import pallas as pl
from jax.experimental.pallas import tpu as pltpu

_LANES = 128          # TPU lane width; feature axes are padded to this
_HID = 8              # hidden width of lin1/lin2


def _round_up(x, m):
    return ((x + m - 1) // m) * m


def _slab_layout(ninputs):
    """Row offsets inside the packed (rows, 128) f32 parameter slab.

    rows [0, r_w1)            : W1 (ninputs, 8)   zero-padded to 128 lanes
    rows [off_w2, off_w2+8)   : W2 (8, 8)         zero-padded
    rows [off_w3, off_w3+8)   : W3 (8, nqubits)   zero-padded
    rows off_b, off_b+1, +2   : b1, b2, b3        zero-padded
    remaining rows            : zero (sublane alignment)
    """
    r_w1 = _round_up(max(ninputs, 1), 8)
    off_w2 = r_w1
    off_w3 = r_w1 + _HID
    off_b = r_w1 + 2 * _HID
    rows = _round_up(off_b + 3, 8)
    return off_w2, off_w3, off_b, rows


# ----------------------------- Pallas kernel ------------------------------ #
def _make_mlp_kernel(ninputs, off_w2, off_w3, off_b):
    """Kernel closure over static widths / slab row offsets."""

    def kernel(alpha_ref, params_ref, y_ref):
        a = alpha_ref[...]            # (TM, 128) f32, lanes >= ninputs are zero
        p = params_ref[...]           # (rows, 128) f32 packed parameter slab

        # ---- lin1 + tanh: unrolled VPU MAC over ninputs weight rows ----
        acc = a[:, 0:1] * p[0:1, :]
        for k in range(1, ninputs):
            acc = acc + a[:, k:k + 1] * p[k:k + 1, :]
        h = jnp.tanh(acc + p[off_b:off_b + 1, :])             # (TM, 128)

        # ---- lin2 + tanh ----
        acc = h[:, 0:1] * p[off_w2:off_w2 + 1, :]
        for k in range(1, _HID):
            acc = acc + h[:, k:k + 1] * p[off_w2 + k:off_w2 + k + 1, :]
        h = jnp.tanh(acc + p[off_b + 1:off_b + 2, :])          # (TM, 128)

        # ---- lin3 (no activation) ----
        acc = h[:, 0:1] * p[off_w3:off_w3 + 1, :]
        for k in range(1, _HID):
            acc = acc + h[:, k:k + 1] * p[off_w3 + k:off_w3 + k + 1, :]
        # Lane-dense full-tile store; lanes >= nqubits carry zeros.
        y_ref[...] = (acc + p[off_b + 2:off_b + 3, :]).astype(y_ref.dtype)

    return kernel


# ------------------------------- wrappers ---------------------------------- #
def _pack_params(w1, b1, w2, b2, w3, b3):
    """Pack all Linear params into a single (8,128)-aligned f32 VMEM slab."""
    ninputs = w1.shape[0]
    nqubits = w3.shape[1]
    off_w2, off_w3, off_b, rows = _slab_layout(ninputs)
    slab = jnp.zeros((rows, _LANES), jnp.float32)
    slab = slab.at[:ninputs, :_HID].set(w1.astype(jnp.float32))
    slab = slab.at[off_w2:off_w2 + _HID, :_HID].set(w2.astype(jnp.float32))
    slab = slab.at[off_w3:off_w3 + _HID, :nqubits].set(w3.astype(jnp.float32))
    slab = slab.at[off_b, :_HID].set(b1.reshape(_HID).astype(jnp.float32))
    slab = slab.at[off_b + 1, :_HID].set(b2.reshape(_HID).astype(jnp.float32))
    slab = slab.at[off_b + 2, :nqubits].set(
        b3.reshape(nqubits).astype(jnp.float32))
    return slab


@functools.partial(jax.jit, static_argnames=("block_m",))
def hybrid_mlp_forward(alpha, w1, b1, w2, b2, w3, b3, *, block_m=256):
    """Batched classical MLP of HybridNeuralNetwork.forward.

    alpha: (M, ninputs) f32 — M candidate parameter vectors (M=1 reproduces the
    module exactly).  Returns (M, nqubits) f32.
    """
    alpha = jnp.asarray(alpha, jnp.float32)
    m, ninputs = alpha.shape
    nqubits = w3.shape[1]
    off_w2, off_w3, off_b, p_rows = _slab_layout(ninputs)

    # Batch tiling: lane-dense, sublane-aligned; batch grid axis is "parallel".
    tm = block_m if m >= block_m else _round_up(m, 8)
    m_pad = _round_up(m, tm)
    grid = (m_pad // tm,)

    a_pad = jnp.zeros((m_pad, _LANES), jnp.float32).at[:m, :ninputs].set(alpha)
    slab = _pack_params(w1, b1, w2, b2, w3, b3)

    cost = pl.CostEstimate(
        flops=int(2 * m_pad * (ninputs * _HID + _HID * _HID + _HID * nqubits)),
        transcendentals=int(2 * _HID * m_pad),
        bytes_accessed=int(4 * (a_pad.size + slab.size + m_pad * _LANES)),
    )

    y_pad = pl.pallas_call(
        _make_mlp_kernel(ninputs, off_w2, off_w3, off_b),
        out_shape=jax.ShapeDtypeStruct((m_pad, _LANES), jnp.float32),
        grid=grid,
        in_specs=[
            pl.BlockSpec((tm, _LANES), lambda i: (i, 0)),        # alpha tile
            pl.BlockSpec((p_rows, _LANES), lambda i: (0, 0)),    # param slab
        ],
        out_specs=pl.BlockSpec((tm, _LANES), lambda i: (i, 0)),
        compiler_params=pltpu.CompilerParams(
            dimension_semantics=("parallel",)),
        cost_estimate=cost,
    )(a_pad, slab)

    return y_pad[:m, :nqubits]


def hybrid_nn_forward(alpha, w1, b1, w2, b2, w3, b3):
    """Module-faithful single-sample path: alpha (1, ninputs) -> y (1, nqubits).

    NOTE: for a lone (1, ninputs) evaluation, fusing the 3-layer MLP into the
    surrounding XLA graph is cheaper than any custom call; the Pallas path
    earns its keep when many alpha candidates are batched (hybrid_mlp_forward).
    """
    return hybrid_mlp_forward(alpha, w1, b1, w2, b2, w3, b3)


# --------------------------- parameter creation ---------------------------- #
def _torch_linear_init(key, fan_in, fan_out):
    """Deterministic analogue of torch.nn.Linear default init.

    Returns weight of shape (fan_in, fan_out) (pre-transposed vs torch) and
    bias of shape (1, fan_out).
    """
    kw, kb = jax.random.split(key)
    bound = 1.0 / jnp.sqrt(jnp.float32(fan_in))
    w = jax.random.uniform(kw, (fan_in, fan_out), jnp.float32, -bound, bound)
    b = jax.random.uniform(kb, (1, fan_out), jnp.float32, -bound, bound)
    return w, b


def make_params(key, ninputs, nqubits):
    k_alpha, k1, k2, k3 = jax.random.split(key, 4)
    # alpha ~ U[0, 2*pi)  (torch.nn.init.uniform_(b=2*pi))
    alpha = jax.random.uniform(k_alpha, (1, ninputs), jnp.float32,
                               0.0, 2.0 * jnp.pi)
    w1, b1 = _torch_linear_init(k1, ninputs, _HID)
    w2, b2 = _torch_linear_init(k2, _HID, _HID)
    w3, b3 = _torch_linear_init(k3, _HID, nqubits)
    return alpha, w1, b1, w2, b2, w3, b3


# ------------------------------ reference ---------------------------------- #
def _reference(a, w1, b1, w2, b2, w3, b3):
    h1 = jnp.tanh(a @ w1 + b1)
    h2 = jnp.tanh(h1 @ w2 + b2)
    return h2 @ w3 + b3


if __name__ == "__main__":
    # Small, module-consistent sizes.
    nqubits = 3
    nlayers = 2        # unused by forward (circuit depth of the qnodes)
    ninputs = 4
    npaulis = 2

    key = jax.random.PRNGKey(0)
    k_params, k_x, k_batch = jax.random.split(key, 3)
    alpha, w1, b1, w2, b2, w3, b3 = make_params(k_params, ninputs, nqubits)

    # `x` is accepted by forward() but never used — mirrored here for fidelity.
    x = jax.random.normal(k_x, (1, ninputs), jnp.float32)  # noqa: F841 (unused)

    # ---- module-faithful single-sample forward ----
    y = hybrid_nn_forward(alpha, w1, b1, w2, b2, w3, b3)
    y = jax.block_until_ready(y)
    y_ref = _reference(alpha, w1, b1, w2, b2, w3, b3)
    assert y.shape == (1, nqubits)
    assert jnp.allclose(y, y_ref, atol=1e-5, rtol=1e-5)

    # ---- batched throughput path: many alpha candidates per call ----
    M = 512
    alphas = jax.random.uniform(k_batch, (M, ninputs), jnp.float32,
                                0.0, 2.0 * jnp.pi)
    yb = jax.block_until_ready(
        hybrid_mlp_forward(alphas, w1, b1, w2, b2, w3, b3))
    yb_ref = _reference(alphas, w1, b1, w2, b2, w3, b3)
    assert yb.shape == (M, nqubits)
    assert jnp.allclose(yb, yb_ref, atol=1e-5, rtol=1e-5)

    # TODO(synk): the `outputs[l, lp, j, part] = qnode(y)` loop evaluates
    # external PennyLane quantum circuits; no Pallas equivalent, so only `y`
    # is produced here.
    outputs = {}
    for l in range(npaulis):
        for lp in range(npaulis):
            for part in ["Re", "Im"]:
                for j in [-1] + list(range(nqubits)):
                    outputs[(l, lp, j, part)] = None  # placeholder for qnode(y)

    print("KERNEL_OK")
</pallas_src>

<mosaic_0001>
module attributes {stable_mosaic.version = 11 : i64} {
  func.func @kernel(%arg0: i32, %arg1: memref<8x128xf32, #tpu.memory_space<vmem>>, %arg2: memref<32x128xf32, #tpu.memory_space<vmem>>, %arg3: memref<8x128xf32, #tpu.memory_space<vmem>>) attributes {dimension_semantics = [#tpu.dimension_semantics<parallel>], iteration_bounds = array<i64: 1>, scalar_prefetch = 0 : i64, scratch_operands = 0 : i64, tpu.core_type = #tpu.core_type<tc>, window_params = [{transform_indices = @transform_0, window_bounds = array<i64: 8, 128>}, {pipeline_mode = #tpu.pipeline_mode<synchronous>, transform_indices = @transform_1, window_bounds = array<i64: 32, 128>}, {transform_indices = @transform_2, window_bounds = array<i64: 8, 128>}]} {
    %c0 = arith.constant 0 : index
    %c0_0 = arith.constant 0 : index
    %0 = vector.load %arg1[%c0, %c0_0] : memref<8x128xf32, #tpu.memory_space<vmem>>, vector<8x128xf32>
    %c0_1 = arith.constant 0 : index
    %c0_2 = arith.constant 0 : index
    %1 = vector.load %arg2[%c0_1, %c0_2] : memref<32x128xf32, #tpu.memory_space<vmem>>, vector<32x128xf32>
    %2 = vector.extract_strided_slice %0 {offsets = [0, 0], sizes = [8, 1], strides = [1, 1]} : vector<8x128xf32> to vector<8x1xf32>
    %3 = vector.extract_strided_slice %1 {offsets = [0, 0], sizes = [1, 128], strides = [1, 1]} : vector<32x128xf32> to vector<1x128xf32>
    %4 = vector.broadcast %2 : vector<8x1xf32> to vector<8x128xf32>
    %5 = vector.broadcast %3 : vector<1x128xf32> to vector<8x128xf32>
    %6 = arith.mulf %4, %5 : vector<8x128xf32>
    %7 = vector.extract_strided_slice %0 {offsets = [0, 1], sizes = [8, 1], strides = [1, 1]} : vector<8x128xf32> to vector<8x1xf32>
    %8 = vector.extract_strided_slice %1 {offsets = [1, 0], sizes = [1, 128], strides = [1, 1]} : vector<32x128xf32> to vector<1x128xf32>
    %9 = vector.broadcast %7 : vector<8x1xf32> to vector<8x128xf32>
    %10 = vector.broadcast %8 : vector<1x128xf32> to vector<8x128xf32>
    %11 = arith.mulf %9, %10 : vector<8x128xf32>
    %12 = arith.addf %6, %11 : vector<8x128xf32>
    %13 = vector.extract_strided_slice %0 {offsets = [0, 2], sizes = [8, 1], strides = [1, 1]} : vector<8x128xf32> to vector<8x1xf32>
    %14 = vector.extract_strided_slice %1 {offsets = [2, 0], sizes = [1, 128], strides = [1, 1]} : vector<32x128xf32> to vector<1x128xf32>
    %15 = vector.broadcast %13 : vector<8x1xf32> to vector<8x128xf32>
    %16 = vector.broadcast %14 : vector<1x128xf32> to vector<8x128xf32>
    %17 = arith.mulf %15, %16 : vector<8x128xf32>
    %18 = arith.addf %12, %17 : vector<8x128xf32>
    %19 = vector.extract_strided_slice %0 {offsets = [0, 3], sizes = [8, 1], strides = [1, 1]} : vector<8x128xf32> to vector<8x1xf32>
    %20 = vector.extract_strided_slice %1 {offsets = [3, 0], sizes = [1, 128], strides = [1, 1]} : vector<32x128xf32> to vector<1x128xf32>
    %21 = vector.broadcast %19 : vector<8x1xf32> to vector<8x128xf32>
    %22 = vector.broadcast %20 : vector<1x128xf32> to vector<8x128xf32>
    %23 = arith.mulf %21, %22 : vector<8x128xf32>
    %24 = arith.addf %18, %23 : vector<8x128xf32>
    %25 = vector.extract_strided_slice %1 {offsets = [24, 0], sizes = [1, 128], strides = [1, 1]} : vector<32x128xf32> to vector<1x128xf32>
    %26 = vector.broadcast %25 : vector<1x128xf32> to vector<8x128xf32>
    %27 = arith.addf %24, %26 : vector<8x128xf32>
    %28 = math.tanh %27 : vector<8x128xf32>
    %29 = vector.extract_strided_slice %28 {offsets = [0, 0], sizes = [8, 1], strides = [1, 1]} : vector<8x128xf32> to vector<8x1xf32>
    %30 = vector.extract_strided_slice %1 {offsets = [8, 0], sizes = [1, 128], strides = [1, 1]} : vector<32x128xf32> to vector<1x128xf32>
    %31 = vector.broadcast %29 : vector<8x1xf32> to vector<8x128xf32>
    %32 = vector.broadcast %30 : vector<1x128xf32> to vector<8x128xf32>
    %33 = arith.mulf %31, %32 : vector<8x128xf32>
    %34 = vector.extract_strided_slice %28 {offsets = [0, 1], sizes = [8, 1], strides = [1, 1]} : vector<8x128xf32> to vector<8x1xf32>
    %35 = vector.extract_strided_slice %1 {offsets = [9, 0], sizes = [1, 128], strides = [1, 1]} : vector<32x128xf32> to vector<1x128xf32>
    %36 = vector.broadcast %34 : vector<8x1xf32> to vector<8x128xf32>
    %37 = vector.broadcast %35 : vector<1x128xf32> to vector<8x128xf32>
    %38 = arith.mulf %36, %37 : vector<8x128xf32>
    %39 = arith.addf %33, %38 : vector<8x128xf32>
    %40 = vector.extract_strided_slice %28 {offsets = [0, 2], sizes = [8, 1], strides = [1, 1]} : vector<8x128xf32> to vector<8x1xf32>
    %41 = vector.extract_strided_slice %1 {offsets = [10, 0], sizes = [1, 128], strides = [1, 1]} : vector<32x128xf32> to vector<1x128xf32>
    %42 = vector.broadcast %40 : vector<8x1xf32> to vector<8x128xf32>
    %43 = vector.broadcast %41 : vector<1x128xf32> to vector<8x128xf32>
    %44 = arith.mulf %42, %43 : vector<8x128xf32>
    %45 = arith.addf %39, %44 : vector<8x128xf32>
    %46 = vector.extract_strided_slice %28 {offsets = [0, 3], sizes = [8, 1], strides = [1, 1]} : vector<8x128xf32> to vector<8x1xf32>
    %47 = vector.extract_strided_slice %1 {offsets = [11, 0], sizes = [1, 128], strides = [1, 1]} : vector<32x128xf32> to vector<1x128xf32>
    %48 = vector.broadcast %46 : vector<8x1xf32> to vector<8x128xf32>
    %49 = vector.broadcast %47 : vector<1x128xf32> to vector<8x128xf32>
    %50 = arith.mulf %48, %49 : vector<8x128xf32>
    %51 = arith.addf %45, %50 : vector<8x128xf32>
    %52 = vector.extract_strided_slice %28 {offsets = [0, 4], sizes = [8, 1], strides = [1, 1]} : vector<8x128xf32> to vector<8x1xf32>
    %53 = vector.extract_strided_slice %1 {offsets = [12, 0], sizes = [1, 128], strides = [1, 1]} : vector<32x128xf32> to vector<1x128xf32>
    %54 = vector.broadcast %52 : vector<8x1xf32> to vector<8x128xf32>
    %55 = vector.broadcast %53 : vector<1x128xf32> to vector<8x128xf32>
    %56 = arith.mulf %54, %55 : vector<8x128xf32>
    %57 = arith.addf %51, %56 : vector<8x128xf32>
    %58 = vector.extract_strided_slice %28 {offsets = [0, 5], sizes = [8, 1], strides = [1, 1]} : vector<8x128xf32> to vector<8x1xf32>
    %59 = vector.extract_strided_slice %1 {offsets = [13, 0], sizes = [1, 128], strides = [1, 1]} : vector<32x128xf32> to vector<1x128xf32>
    %60 = vector.broadcast %58 : vector<8x1xf32> to vector<8x128xf32>
    %61 = vector.broadcast %59 : vector<1x128xf32> to vector<8x128xf32>
    %62 = arith.mulf %60, %61 : vector<8x128xf32>
    %63 = arith.addf %57, %62 : vector<8x128xf32>
    %64 = vector.extract_strided_slice %28 {offsets = [0, 6], sizes = [8, 1], strides = [1, 1]} : vector<8x128xf32> to vector<8x1xf32>
    %65 = vector.extract_strided_slice %1 {offsets = [14, 0], sizes = [1, 128], strides = [1, 1]} : vector<32x128xf32> to vector<1x128xf32>
    %66 = vector.broadcast %64 : vector<8x1xf32> to vector<8x128xf32>
    %67 = vector.broadcast %65 : vector<1x128xf32> to vector<8x128xf32>
    %68 = arith.mulf %66, %67 : vector<8x128xf32>
    %69 = arith.addf %63, %68 : vector<8x128xf32>
    %70 = vector.extract_strided_slice %28 {offsets = [0, 7], sizes = [8, 1], strides = [1, 1]} : vector<8x128xf32> to vector<8x1xf32>
    %71 = vector.extract_strided_slice %1 {offsets = [15, 0], sizes = [1, 128], strides = [1, 1]} : vector<32x128xf32> to vector<1x128xf32>
    %72 = vector.broadcast %70 : vector<8x1xf32> to vector<8x128xf32>
    %73 = vector.broadcast %71 : vector<1x128xf32> to vector<8x128xf32>
    %74 = arith.mulf %72, %73 : vector<8x128xf32>
    %75 = arith.addf %69, %74 : vector<8x128xf32>
    %76 = vector.extract_strided_slice %1 {offsets = [25, 0], sizes = [1, 128], strides = [1, 1]} : vector<32x128xf32> to vector<1x128xf32>
    %77 = vector.broadcast %76 : vector<1x128xf32> to vector<8x128xf32>
    %78 = arith.addf %75, %77 : vector<8x128xf32>
    %79 = math.tanh %78 : vector<8x128xf32>
    %80 = vector.extract_strided_slice %79 {offsets = [0, 0], sizes = [8, 1], strides = [1, 1]} : vector<8x128xf32> to vector<8x1xf32>
    %81 = vector.extract_strided_slice %1 {offsets = [16, 0], sizes = [1, 128], strides = [1, 1]} : vector<32x128xf32> to vector<1x128xf32>
    %82 = vector.broadcast %80 : vector<8x1xf32> to vector<8x128xf32>
    %83 = vector.broadcast %81 : vector<1x128xf32> to vector<8x128xf32>
    %84 = arith.mulf %82, %83 : vector<8x128xf32>
    %85 = vector.extract_strided_slice %79 {offsets = [0, 1], sizes = [8, 1], strides = [1, 1]} : vector<8x128xf32> to vector<8x1xf32>
    %86 = vector.extract_strided_slice %1 {offsets = [17, 0], sizes = [1, 128], strides = [1, 1]} : vector<32x128xf32> to vector<1x128xf32>
    %87 = vector.broadcast %85 : vector<8x1xf32> to vector<8x128xf32>
    %88 = vector.broadcast %86 : vector<1x128xf32> to vector<8x128xf32>
    %89 = arith.mulf %87, %88 : vector<8x128xf32>
    %90 = arith.addf %84, %89 : vector<8x128xf32>
    %91 = vector.extract_strided_slice %79 {offsets = [0, 2], sizes = [8, 1], strides = [1, 1]} : vector<8x128xf32> to vector<8x1xf32>
    %92 = vector.extract_strided_slice %1 {offsets = [18, 0], sizes = [1, 128], strides = [1, 1]} : vector<32x128xf32> to vector<1x128xf32>
    %93 = vector.broadcast %91 : vector<8x1xf32> to vector<8x128xf32>
    %94 = vector.broadcast %92 : vector<1x128xf32> to vector<8x128xf32>
    %95 = arith.mulf %93, %94 : vector<8x128xf32>
    %96 = arith.addf %90, %95 : vector<8x128xf32>
    %97 = vector.extract_strided_slice %79 {offsets = [0, 3], sizes = [8, 1], strides = [1, 1]} : vector<8x128xf32> to vector<8x1xf32>
    %98 = vector.extract_strided_slice %1 {offsets = [19, 0], sizes = [1, 128], strides = [1, 1]} : vector<32x128xf32> to vector<1x128xf32>
    %99 = vector.broadcast %97 : vector<8x1xf32> to vector<8x128xf32>
    %100 = vector.broadcast %98 : vector<1x128xf32> to vector<8x128xf32>
    %101 = arith.mulf %99, %100 : vector<8x128xf32>
    %102 = arith.addf %96, %101 : vector<8x128xf32>
    %103 = vector.extract_strided_slice %79 {offsets = [0, 4], sizes = [8, 1], strides = [1, 1]} : vector<8x128xf32> to vector<8x1xf32>
    %104 = vector.extract_strided_slice %1 {offsets = [20, 0], sizes = [1, 128], strides = [1, 1]} : vector<32x128xf32> to vector<1x128xf32>
    %105 = vector.broadcast %103 : vector<8x1xf32> to vector<8x128xf32>
    %106 = vector.broadcast %104 : vector<1x128xf32> to vector<8x128xf32>
    %107 = arith.mulf %105, %106 : vector<8x128xf32>
    %108 = arith.addf %102, %107 : vector<8x128xf32>
    %109 = vector.extract_strided_slice %79 {offsets = [0, 5], sizes = [8, 1], strides = [1, 1]} : vector<8x128xf32> to vector<8x1xf32>
    %110 = vector.extract_strided_slice %1 {offsets = [21, 0], sizes = [1, 128], strides = [1, 1]} : vector<32x128xf32> to vector<1x128xf32>
    %111 = vector.broadcast %109 : vector<8x1xf32> to vector<8x128xf32>
    %112 = vector.broadcast %110 : vector<1x128xf32> to vector<8x128xf32>
    %113 = arith.mulf %111, %112 : vector<8x128xf32>
    %114 = arith.addf %108, %113 : vector<8x128xf32>
    %115 = vector.extract_strided_slice %79 {offsets = [0, 6], sizes = [8, 1], strides = [1, 1]} : vector<8x128xf32> to vector<8x1xf32>
    %116 = vector.extract_strided_slice %1 {offsets = [22, 0], sizes = [1, 128], strides = [1, 1]} : vector<32x128xf32> to vector<1x128xf32>
    %117 = vector.broadcast %115 : vector<8x1xf32> to vector<8x128xf32>
    %118 = vector.broadcast %116 : vector<1x128xf32> to vector<8x128xf32>
    %119 = arith.mulf %117, %118 : vector<8x128xf32>
    %120 = arith.addf %114, %119 : vector<8x128xf32>
    %121 = vector.extract_strided_slice %79 {offsets = [0, 7], sizes = [8, 1], strides = [1, 1]} : vector<8x128xf32> to vector<8x1xf32>
    %122 = vector.extract_strided_slice %1 {offsets = [23, 0], sizes = [1, 128], strides = [1, 1]} : vector<32x128xf32> to vector<1x128xf32>
    %123 = vector.broadcast %121 : vector<8x1xf32> to vector<8x128xf32>
    %124 = vector.broadcast %122 : vector<1x128xf32> to vector<8x128xf32>
    %125 = arith.mulf %123, %124 : vector<8x128xf32>
    %126 = arith.addf %120, %125 : vector<8x128xf32>
    %127 = vector.extract_strided_slice %1 {offsets = [26, 0], sizes = [1, 128], strides = [1, 1]} : vector<32x128xf32> to vector<1x128xf32>
    %128 = vector.broadcast %127 : vector<1x128xf32> to vector<8x128xf32>
    %129 = arith.addf %126, %128 : vector<8x128xf32>
    %c0_3 = arith.constant 0 : index
    %c0_4 = arith.constant 0 : index
    %130 = vector.load %arg3[%c0_3, %c0_4] : memref<8x128xf32, #tpu.memory_space<vmem>>, vector<8x128xf32>
    tpu.vector_store %arg3[%c0_3, %c0_4], %129 {strides = array<i32>} : memref<8x128xf32, #tpu.memory_space<vmem>>, vector<8x128xf32>,
    return
  }
  func.func @transform_0(%arg0: i32) -> (i32, i32) {
    %c0_i32 = arith.constant 0 : i32
    %c0_i32_0 = arith.constant 0 : i32
    return %arg0, %c0_i32 : i32, i32
  }
  func.func @transform_1(%arg0: i32) -> (i32, i32) {
    %c0_i32 = arith.constant 0 : i32
    %c0_i32_0 = arith.constant 0 : i32
    %c0_i32_1 = arith.constant 0 : i32
    return %c0_i32, %c0_i32_0 : i32, i32
  }
  func.func @transform_2(%arg0: i32) -> (i32, i32) {
    %c0_i32 = arith.constant 0 : i32
    %c0_i32_0 = arith.constant 0 : i32
    return %arg0, %c0_i32 : i32, i32
  }
}

</mosaic_0001>

<llo_original>
// kernel: hybrid_mlp_forward.1
$region0: #{hybrid_mlp_forward.1}
  #allocation0 [shape = 'u32[]', space=smem, size = 0x4, offset = 0x4, fixed_abs, tag = 'smem constant byte address 0x4 - core index']
  #allocation1 [shape = 'u32[144,128]{1,0:T(1,128)}', space=vmem, size = 0x12000, scoped, tag = 'internal scratch']
  %s0 = inlined_call_operand.vmem [shape: f32[8,128], index: 0, kind: input, shape index: {}]
  %s1 = inlined_call_operand.vmem [shape: f32[32,128], index: 1, kind: input, shape index: {}]
  %s2 = inlined_call_operand.vmem [shape: f32[8,128], index: 2, kind: output, shape index: {}]
  %s3 = sld [smem:[#allocation0]]
  $region18: #{hybrid_mlp_forward.1} parent=0
    _
  %s5 = ssub.s32 1, %s3
  %s6 = scalar_select 0, %s5, %s3
  // Predicated region
  $region2: #{hybrid_mlp_forward.1} parent=0 // pred_check
    _
  $region3: #{hybrid_mlp_forward.1} parent=0 // pred_check_branch
    %8 = sbr.rel (0) target = $region5
  $region4: #{hybrid_mlp_forward.1} parent=0 // pred_region
    _
  $region5: #{hybrid_mlp_forward.1} parent=0 // pred_fallthru
    _
  // Predicated region
  $region6: #{hybrid_mlp_forward.1} parent=0 // pred_check
    _
  $region7: #{hybrid_mlp_forward.1} parent=0 // pred_check_branch
    %10 = sbr.rel (0) target = $region9
  $region8: #{hybrid_mlp_forward.1} parent=0 // pred_region
    _
  $region9: #{hybrid_mlp_forward.1} parent=0 // pred_fallthru
    _
  %v11 = vld [vmem:[%s0] sm:$0xff]
  %v12 = vld [vmem:[%s1] sm:$0xff]
  %v13 = vld [vmem:[%s1 + $0x8] sm:$0xff]
  %v14 = vld [vmem:[%s1 + $0x10] sm:$0xff]
  %v15 = vld [vmem:[%s1 + $0x18] sm:$0xff]
  %17 = vset.pattern.permute.xlu0 0
  %18 = vperm.xlu0 %17, %v11
  %v19 = vpop.permute.xlu0 %18
  %v21 = vlaneseq
  %v22 = vshrl.u32 %v21, 7
  %v23 = vsub.s32 0, %v22
  %v24 = vrot.slane %v12, %v23
  %v25 = vmul.f32 %v19, %v24
  %26 = vset.pattern.permute.xlu0 1
  %27 = vperm.xlu0 %26, %v11
  %v28 = vpop.permute.xlu0 %27
  %v30 = vlaneseq
  %v31 = vshrl.u32 %v30, 7
  %v32 = vsub.s32 1, %v31
  %v33 = vrot.slane %v12, %v32
  %v34 = vmul.f32 %v28, %v33
  %v35 = vadd.f32 %v25, %v34
  %36 = vset.pattern.permute.xlu0 2
  %37 = vperm.xlu0 %36, %v11
  %v38 = vpop.permute.xlu0 %37
  %v40 = vlaneseq
  %v41 = vshrl.u32 %v40, 7
  %v42 = vsub.s32 2, %v41
  %v43 = vrot.slane %v12, %v42
  %v44 = vmul.f32 %v38, %v43
  %v45 = vadd.f32 %v35, %v44
  %46 = vset.pattern.permute.xlu0 3
  %47 = vperm.xlu0 %46, %v11
  %v48 = vpop.permute.xlu0 %47
  %v50 = vlaneseq
  %v51 = vshrl.u32 %v50, 7
  %v52 = vsub.s32 3, %v51
  %v53 = vrot.slane %v12, %v52
  %v54 = vmul.f32 %v48, %v53
  %v55 = vadd.f32 %v45, %v54
  %v56 = vlaneseq
  %v57 = vshrl.u32 %v56, 7
  %v58 = vsub.s32 0, %v57
  %v59 = vrot.slane %v15, %v58
  %v60 = vadd.f32 %v55, %v59
  %v61 = vtanh.pop %v60
  %63 = vset.pattern.permute.xlu0 0
  %64 = vperm.xlu0 %63, %v61
  %v65 = vpop.permute.xlu0 %64
  %v67 = vlaneseq
  %v68 = vshrl.u32 %v67, 7
  %v69 = vsub.s32 0, %v68
  %v70 = vrot.slane %v13, %v69
  %v71 = vmul.f32 %v65, %v70
  %72 = vset.pattern.permute.xlu0 1
  %73 = vperm.xlu0 %72, %v61
  %v74 = vpop.permute.xlu0 %73
  %v76 = vlaneseq
  %v77 = vshrl.u32 %v76, 7
  %v78 = vsub.s32 1, %v77
  %v79 = vrot.slane %v13, %v78
  %v80 = vmul.f32 %v74, %v79
  %v81 = vadd.f32 %v71, %v80
  %82 = vset.pattern.permute.xlu0 2
  %83 = vperm.xlu0 %82, %v61
  %v84 = vpop.permute.xlu0 %83
  %v86 = vlaneseq
  %v87 = vshrl.u32 %v86, 7
  %v88 = vsub.s32 2, %v87
  %v89 = vrot.slane %v13, %v88
  %v90 = vmul.f32 %v84, %v89
  %v91 = vadd.f32 %v81, %v90
  %92 = vset.pattern.permute.xlu0 3
  %93 = vperm.xlu0 %92, %v61
  %v94 = vpop.permute.xlu0 %93
  %v96 = vlaneseq
  %v97 = vshrl.u32 %v96, 7
  %v98 = vsub.s32 3, %v97
  %v99 = vrot.slane %v13, %v98
  %v100 = vmul.f32 %v94, %v99
  %v101 = vadd.f32 %v91, %v100
  %102 = vset.pattern.permute.xlu0 4
  %103 = vperm.xlu0 %102, %v61
  %v104 = vpop.permute.xlu0 %103
  %v106 = vlaneseq
  %v107 = vshrl.u32 %v106, 7
  %v108 = vsub.s32 4, %v107
  %v109 = vrot.slane %v13, %v108
  %v110 = vmul.f32 %v104, %v109
  %v111 = vadd.f32 %v101, %v110
  %112 = vset.pattern.permute.xlu0 5
  %113 = vperm.xlu0 %112, %v61
  %v114 = vpop.permute.xlu0 %113
  %v116 = vlaneseq
  %v117 = vshrl.u32 %v116, 7
  %v118 = vsub.s32 5, %v117
  %v119 = vrot.slane %v13, %v118
  %v120 = vmul.f32 %v114, %v119
  %v121 = vadd.f32 %v111, %v120
  %122 = vset.pattern.permute.xlu0 6
  %123 = vperm.xlu0 %122, %v61
  %v124 = vpop.permute.xlu0 %123
  %v126 = vlaneseq
  %v127 = vshrl.u32 %v126, 7
  %v128 = vsub.s32 6, %v127
  %v129 = vrot.slane %v13, %v128
  %v130 = vmul.f32 %v124, %v129
  %v131 = vadd.f32 %v121, %v130
  %132 = vset.pattern.permute.xlu0 7
  %133 = vperm.xlu0 %132, %v61
  %v134 = vpop.permute.xlu0 %133
  %v136 = vlaneseq
  %v137 = vshrl.u32 %v136, 7
  %v138 = vsub.s32 7, %v137
  %v139 = vrot.slane %v13, %v138
  %v140 = vmul.f32 %v134, %v139
  %v141 = vadd.f32 %v131, %v140
  %v142 = vlaneseq
  %v143 = vshrl.u32 %v142, 7
  %v144 = vsub.s32 1, %v143
  %v145 = vrot.slane %v15, %v144
  %v146 = vadd.f32 %v141, %v145
  %v147 = vtanh.pop %v146
  %149 = vset.pattern.permute.xlu0 0
  %150 = vperm.xlu0 %149, %v147
  %v151 = vpop.permute.xlu0 %150
  %v153 = vlaneseq
  %v154 = vshrl.u32 %v153, 7
  %v155 = vsub.s32 0, %v154
  %v156 = vrot.slane %v14, %v155
  %v157 = vmul.f32 %v151, %v156
  %158 = vset.pattern.permute.xlu0 1
  %159 = vperm.xlu0 %158, %v147
  %v160 = vpop.permute.xlu0 %159
  %v162 = vlaneseq
  %v163 = vshrl.u32 %v162, 7
  %v164 = vsub.s32 1, %v163
  %v165 = vrot.slane %v14, %v164
  %v166 = vmul.f32 %v160, %v165
  %v167 = vadd.f32 %v157, %v166
  %168 = vset.pattern.permute.xlu0 2
  %169 = vperm.xlu0 %168, %v147
  %v170 = vpop.permute.xlu0 %169
  %v172 = vlaneseq
  %v173 = vshrl.u32 %v172, 7
  %v174 = vsub.s32 2, %v173
  %v175 = vrot.slane %v14, %v174
  %v176 = vmul.f32 %v170, %v175
  %v177 = vadd.f32 %v167, %v176
  %178 = vset.pattern.permute.xlu0 3
  %179 = vperm.xlu0 %178, %v147
  %v180 = vpop.permute.xlu0 %179
  %v182 = vlaneseq
  %v183 = vshrl.u32 %v182, 7
  %v184 = vsub.s32 3, %v183
  %v185 = vrot.slane %v14, %v184
  %v186 = vmul.f32 %v180, %v185
  %v187 = vadd.f32 %v177, %v186
  %188 = vset.pattern.permute.xlu0 4
  %189 = vperm.xlu0 %188, %v147
  %v190 = vpop.permute.xlu0 %189
  %v192 = vlaneseq
  %v193 = vshrl.u32 %v192, 7
  %v194 = vsub.s32 4, %v193
  %v195 = vrot.slane %v14, %v194
  %v196 = vmul.f32 %v190, %v195
  %v197 = vadd.f32 %v187, %v196
  %198 = vset.pattern.permute.xlu0 5
  %199 = vperm.xlu0 %198, %v147
  %v200 = vpop.permute.xlu0 %199
  %v202 = vlaneseq
  %v203 = vshrl.u32 %v202, 7
  %v204 = vsub.s32 5, %v203
  %v205 = vrot.slane %v14, %v204
  %v206 = vmul.f32 %v200, %v205
  %v207 = vadd.f32 %v197, %v206
  %208 = vset.pattern.permute.xlu0 6
  %209 = vperm.xlu0 %208, %v147
  %v210 = vpop.permute.xlu0 %209
  %v212 = vlaneseq
  %v213 = vshrl.u32 %v212, 7
  %v214 = vsub.s32 6, %v213
  %v215 = vrot.slane %v14, %v214
  %v216 = vmul.f32 %v210, %v215
  %v217 = vadd.f32 %v207, %v216
  %218 = vset.pattern.permute.xlu0 7
  %219 = vperm.xlu0 %218, %v147
  %v220 = vpop.permute.xlu0 %219
  %v222 = vlaneseq
  %v223 = vshrl.u32 %v222, 7
  %v224 = vsub.s32 7, %v223
  %v225 = vrot.slane %v14, %v224
  %v226 = vmul.f32 %v220, %v225
  %v227 = vadd.f32 %v217, %v226
  %v228 = vlaneseq
  %v229 = vshrl.u32 %v228, 7
  %v230 = vsub.s32 2, %v229
  %v231 = vrot.slane %v15, %v230
  %v232 = vadd.f32 %v227, %v231
  %233 = vst [vmem:[%s2] sm:$0xff] %v232
  // Predicated region
  $region10: #{hybrid_mlp_forward.1} parent=0 // pred_check
    _
  $region11: #{hybrid_mlp_forward.1} parent=0 // pred_check_branch
    %235 = sbr.rel (0) target = $region13
  $region12: #{hybrid_mlp_forward.1} parent=0 // pred_region
    _
  $region13: #{hybrid_mlp_forward.1} parent=0 // pred_fallthru
    _
  // Predicated region
  $region14: #{hybrid_mlp_forward.1} parent=0 // pred_check
    _
  $region15: #{hybrid_mlp_forward.1} parent=0 // pred_check_branch
    %237 = sbr.rel (0) target = $region17
  $region16: #{hybrid_mlp_forward.1} parent=0 // pred_region
    _
  $region17: #{hybrid_mlp_forward.1} parent=0 // pred_fallthru
    _

</llo_original>
